<compile_context>
chip_gen: v7x
topology: tpu7x:2x2x1
jax: 0.10.0
libtpu: 0.0.40
codegen_flags: <defaults>
</compile_context>

<pallas_src>
import functools

import jax
import jax.numpy as jnp
from jax.experimental import pallas as pl
from jax.experimental.pallas import tpu as pltpu


# ----------------------------------------------------------------------------
# Pallas kernels
# ----------------------------------------------------------------------------

def _kp_kernel(x_ref, w_ref, b_ref, grid_ref, o_ref):
    # One frame per grid step.
    # x_ref: (1, C, HW)  w_ref: (K, C)  b_ref: (K, 1)  grid_ref: (HW, 2)  o: (1, K, 2)
    x = x_ref[0]                                                       # (C, HW)
    hm = jnp.dot(w_ref[...], x, preferred_element_type=jnp.float32) + b_ref[...]  # (K, HW)
    m = jnp.max(hm, axis=-1, keepdims=True)
    e = jnp.exp(hm - m)
    p = e / jnp.sum(e, axis=-1, keepdims=True)                         # spatial softmax
    coords = jnp.dot(p, grid_ref[...], preferred_element_type=jnp.float32)  # (K, 2)
    o_ref[...] = coords[None]


def pallas_kp(x, wT, bT, grid2):
    # x: (BT, C, HW) -> (BT, K, 2)
    BT, C, HW = x.shape
    K = wT.shape[0]
    return pl.pallas_call(
        _kp_kernel,
        out_shape=jax.ShapeDtypeStruct((BT, K, 2), jnp.float32),
        grid=(BT,),
        in_specs=[
            pl.BlockSpec((1, C, HW), lambda i: (i, 0, 0)),
            pl.BlockSpec((K, C), lambda i: (0, 0)),
            pl.BlockSpec((K, 1), lambda i: (0, 0)),
            pl.BlockSpec((HW, 2), lambda i: (0, 0)),
        ],
        out_specs=pl.BlockSpec((1, K, 2), lambda i: (i, 0, 0)),
        compiler_params=pltpu.CompilerParams(dimension_semantics=("parallel",)),
    )(x, wT, bT, grid2)


def _gen_mlp_kernel(x_ref, w1_ref, b1_ref, w2_ref, b2_ref, o_ref):
    # Transposed layout: x_ref (Cin, tm) -> o_ref (Cout, tm)  (lane-dense stores).
    h = jnp.dot(w1_ref[...], x_ref[...], preferred_element_type=jnp.float32) + b1_ref[...]
    h = jnp.maximum(h, 0.0)
    y = jnp.dot(w2_ref[...], h, preferred_element_type=jnp.float32) + b2_ref[...]
    o_ref[...] = jax.nn.sigmoid(y)


def pallas_gen_mlp_t(xT, w1T, b1T, w2T, b2T, tm=512):
    Cin, M = xT.shape
    hidden = w1T.shape[0]
    Cout = w2T.shape[0]
    nsteps = pl.cdiv(M, tm)
    M_pad = nsteps * tm
    if M_pad != M:
        xT = jnp.pad(xT, ((0, 0), (0, M_pad - M)))
    out = pl.pallas_call(
        _gen_mlp_kernel,
        out_shape=jax.ShapeDtypeStruct((Cout, M_pad), jnp.float32),
        grid=(nsteps,),
        in_specs=[
            pl.BlockSpec((Cin, tm), lambda i: (0, i)),
            pl.BlockSpec((hidden, Cin), lambda i: (0, 0)),
            pl.BlockSpec((hidden, 1), lambda i: (0, 0)),
            pl.BlockSpec((Cout, hidden), lambda i: (0, 0)),
            pl.BlockSpec((Cout, 1), lambda i: (0, 0)),
        ],
        out_specs=pl.BlockSpec((Cout, tm), lambda i: (0, i)),
        compiler_params=pltpu.CompilerParams(dimension_semantics=("parallel",)),
    )(xT, w1T, b1T, w2T, b2T)
    return out[:, :M]


def _leaky(h):
    return jnp.where(h > 0, h, 0.2 * h)


def _disc_loss_kernel(xg_ref, xr_ref, xd_ref, w1_ref, b1_ref, w2_ref, b2_ref,
                      w3_ref, b3_ref, o_ref, acc_ref, *, m_valid, n_ch):
    # Fused: disc(generated) + disc(real) + all generator-loss partial sums.
    # Feature maps stay in VMEM/regs; only 5 scalars leave the kernel.
    pid = pl.program_id(0)
    tm = xg_ref.shape[1]

    @pl.when(pid == 0)
    def _():
        for k in range(8):
            acc_ref[k] = 0.0

    xg = xg_ref[...]                     # (C+K, tm)  generated video + kp heatmaps
    xr = xr_ref[...]                     # (C+K, tm)  real video + kp heatmaps

    # discriminator forward on generated input
    h1g = _leaky(jnp.dot(w1_ref[...], xg, preferred_element_type=jnp.float32) + b1_ref[...])
    h2g = _leaky(jnp.dot(w2_ref[...], h1g, preferred_element_type=jnp.float32) + b2_ref[...])
    sg = jnp.dot(w3_ref[...], h2g, preferred_element_type=jnp.float32) + b3_ref[...]   # (1, tm)

    # discriminator forward on real input (score head skipped: dead in generator_loss)
    h1r = _leaky(jnp.dot(w1_ref[...], xr, preferred_element_type=jnp.float32) + b1_ref[...])
    h2r = _leaky(jnp.dot(w2_ref[...], h1r, preferred_element_type=jnp.float32) + b2_ref[...])

    # Padded lanes feed zeros to both branches, so every |gen - real| term is
    # exactly 0 there; only the GAN term needs an explicit lane mask.
    lane = jax.lax.broadcasted_iota(jnp.int32, (1, tm), 1) + pid * tm
    valid = lane < m_valid

    vid_g = xg[:n_ch, :]
    vid_r = xr[:n_ch, :]
    vid_d = xd_ref[...]

    acc_ref[0] += jnp.sum(jnp.abs(vid_r - vid_d))       # reconstruction_deformed
    acc_ref[1] += jnp.sum(jnp.abs(vid_g - vid_r))       # reconstruction[0] (videos)
    acc_ref[2] += jnp.sum(jnp.abs(h1g - h1r))           # reconstruction[1] (feat map 1)
    acc_ref[3] += jnp.sum(jnp.abs(h2g - h2r))           # reconstruction[2] (feat map 2)
    d = sg - 1.0
    acc_ref[4] += jnp.sum(jnp.where(valid, d * d, 0.0)) # generator_gan

    @pl.when(pid == pl.num_programs(0) - 1)
    def _():
        for k in range(8):
            o_ref[k] = acc_ref[k]


def pallas_disc_loss(xg, xr, xd, w1, b1, w2, b2, w3, b3, *, n_ch, tm=512):
    Cin, M = xg.shape
    F1 = w1.shape[0]
    F2 = w2.shape[0]
    nsteps = pl.cdiv(M, tm)
    M_pad = nsteps * tm
    if M_pad != M:
        pad = ((0, 0), (0, M_pad - M))
        xg = jnp.pad(xg, pad)
        xr = jnp.pad(xr, pad)
        xd = jnp.pad(xd, pad)
    kernel = functools.partial(_disc_loss_kernel, m_valid=M, n_ch=n_ch)
    return pl.pallas_call(
        kernel,
        out_shape=jax.ShapeDtypeStruct((8,), jnp.float32),
        grid=(nsteps,),
        in_specs=[
            pl.BlockSpec((Cin, tm), lambda i: (0, i)),
            pl.BlockSpec((Cin, tm), lambda i: (0, i)),
            pl.BlockSpec((n_ch, tm), lambda i: (0, i)),
            pl.BlockSpec((F1, Cin), lambda i: (0, 0)),
            pl.BlockSpec((F1, 1), lambda i: (0, 0)),
            pl.BlockSpec((F2, F1), lambda i: (0, 0)),
            pl.BlockSpec((F2, 1), lambda i: (0, 0)),
            pl.BlockSpec((1, F2), lambda i: (0, 0)),
            pl.BlockSpec((1, 1), lambda i: (0, 0)),
        ],
        out_specs=pl.BlockSpec(memory_space=pltpu.MemorySpace.SMEM),
        scratch_shapes=[pltpu.SMEM((8,), jnp.float32)],
        compiler_params=pltpu.CompilerParams(dimension_semantics=("arbitrary",)),
    )(xg, xr, xd, w1, b1, w2, b2, w3, b3)


# ----------------------------------------------------------------------------
# Glue (plain JAX): coordinate grids, gaussian heatmaps, kp splitting, layout
# ----------------------------------------------------------------------------

def make_coordinate_grid(H, W):
    y = jnp.linspace(-1.0, 1.0, H)
    x = jnp.linspace(-1.0, 1.0, W)
    yy, xx = jnp.meshgrid(y, x, indexing="ij")
    return jnp.stack([xx, yy], axis=-1)  # (H, W, 2)


def kp2gaussian(mean, H, W, var=0.01):
    # mean: (B, T, K, 2) in [-1, 1] -> heatmaps (B, T, K, H, W)
    grid = make_coordinate_grid(H, W)                       # (H, W, 2)
    d = grid[None, None, None] - mean[:, :, :, None, None]  # (B,T,K,H,W,2)
    return jnp.exp(-jnp.sum(d * d, axis=-1) / (2.0 * var))


def split_kp(kp_joined, detach=False):
    if detach:
        kp_video = {k: jax.lax.stop_gradient(v[:, 1:]) for k, v in kp_joined.items()}
        kp_appearance = {k: jax.lax.stop_gradient(v[:, :1]) for k, v in kp_joined.items()}
    else:
        kp_video = {k: v[:, 1:] for k, v in kp_joined.items()}
        kp_appearance = {k: v[:, :1] for k, v in kp_joined.items()}
    return {"kp_driving": kp_video, "kp_source": kp_appearance}


def to_channels_first_2d(x):
    # (B, C, T, H, W) -> (C, B*T*H*W)
    B, C = x.shape[0], x.shape[1]
    return jnp.transpose(x, (1, 0, 2, 3, 4)).reshape(C, -1)


def from_channels_first_2d(y, B, C, T, H, W):
    # (C, B*T*H*W) -> (B, C, T, H, W)
    return jnp.transpose(y.reshape(C, B, T, H, W), (1, 0, 2, 3, 4))


# ----------------------------------------------------------------------------
# Sub-modules (synthetic, deterministic params; hot paths in Pallas)
# ----------------------------------------------------------------------------

def kp_extractor_forward(params, frames):
    # frames: (B, C, T, H, W) -> {'mean': (B, T, K, 2)}
    B, C, T, H, W = frames.shape
    x = jnp.transpose(frames, (0, 2, 1, 3, 4)).reshape(B * T, C, H * W)
    coords = pallas_kp(x, params["w"], params["b"], params["grid"])   # (B*T, K, 2)
    K = params["w"].shape[0]
    return {"mean": coords.reshape(B, T, K, 2)}


def generator_forward(params, source, kp_driving, kp_source):
    # source: (B, C, 1, H, W)
    B, C, _, H, W = source.shape
    T = kp_driving["mean"].shape[1]
    h_drv = kp2gaussian(kp_driving["mean"], H, W)             # (B,T,K,H,W)
    h_src = kp2gaussian(kp_source["mean"], H, W)              # (B,1,K,H,W)
    h_diff = h_drv - h_src                                    # (B,T,K,H,W)

    src_t = jnp.broadcast_to(source[:, :, 0:1], (B, C, T, H, W))
    feat = jnp.concatenate([src_t, jnp.transpose(h_diff, (0, 2, 1, 3, 4))], axis=1)  # (B,C+K,T,H,W)
    xT = to_channels_first_2d(feat)                           # (C+K, M)

    yT = pallas_gen_mlp_t(xT, params["w1"], params["b1"], params["w2"], params["b2"])  # (C, M)
    video_prediction = from_channels_first_2d(yT, B, C, T, H, W)

    # TODO(synk): the original generator warps the source with a dense motion
    # field via grid_sample; no clean Pallas equivalent here, so the deformed
    # video is an identity (source broadcast over frames).
    video_deformed = src_t
    return {"video_prediction": video_prediction, "video_deformed": video_deformed}


def fused_discriminator_and_generator_loss(disc_params, video_prediction, video_real,
                                           video_deformed, kp_driving, loss_weights):
    # Builds both discriminator inputs, runs the fused disc+loss kernel and
    # returns the weighted loss list (same ordering / skip-on-zero-weight
    # semantics as the original generator_loss).
    B, C, T, H, W = video_real.shape
    hm = kp2gaussian(kp_driving["mean"], H, W)                # (B,T,K,H,W)
    hm_cf = jnp.transpose(hm, (0, 2, 1, 3, 4))                # (B,K,T,H,W)

    feat_gen = jnp.concatenate([video_prediction, hm_cf], axis=1)   # (B,C+K,T,H,W)
    feat_real = jnp.concatenate([video_real, hm_cf], axis=1)

    xg = to_channels_first_2d(feat_gen)                       # (C+K, M)
    xr = to_channels_first_2d(feat_real)                      # (C+K, M)
    xd = to_channels_first_2d(video_deformed)                 # (C,   M)

    sums = pallas_disc_loss(
        xg, xr, xd,
        disc_params["w1"], disc_params["b1"],
        disc_params["w2"], disc_params["b2"],
        disc_params["w3"], disc_params["b3"],
        n_ch=C,
    )

    M = B * T * H * W
    F1 = disc_params["w1"].shape[0]
    F2 = disc_params["w2"].shape[0]
    l1_def = sums[0] / (M * C)
    l1_rec = [sums[1] / (M * C), sums[2] / (M * F1), sums[3] / (M * F2)]
    mse_gan = sums[4] / M

    loss_values = []
    if loss_weights["reconstruction_deformed"] != 0:
        loss_values.append(loss_weights["reconstruction_deformed"] * l1_def)
    if loss_weights["reconstruction"] is not None:
        for i, r in enumerate(l1_rec):
            if loss_weights["reconstruction"][i] == 0:
                continue
            loss_values.append(loss_weights["reconstruction"][i] * r)
    loss_values.append(loss_weights["generator_gan"] * mse_gan)
    return loss_values


# ----------------------------------------------------------------------------
# GeneratorFullModel.forward
# ----------------------------------------------------------------------------

class Opt:
    is_original = True


def generator_full_model_forward(params, x, train_params, opt):
    # kp extraction on concatenated [source, video] along the frame axis (dim=2)
    frames = jnp.concatenate([x["source"], x["video"]], axis=2)
    kp_joined = kp_extractor_forward(params["kp"], frames)

    kp_gen = split_kp(kp_joined, train_params["detach_kp_generator"])
    generated = generator_forward(params["gen"], x["source"], **kp_gen)

    kp_dict = split_kp(kp_joined, False)
    video_prediction = generated["video_prediction"]
    video_deformed = generated["video_deformed"]

    # Both discriminator passes + all loss reductions are fused in one kernel;
    # the feature maps never round-trip through HBM and the dead real-score
    # head is not computed.
    losses = fused_discriminator_and_generator_loss(
        params["disc"], video_prediction, x["video"], video_deformed,
        kp_dict["kp_driving"], train_params["loss_weights"],
    )

    generated.update(kp_dict)
    if opt.is_original:
        kp_dict = split_kp(kp_joined, True)
    return tuple(losses) + (generated, kp_dict)


# ----------------------------------------------------------------------------
# Deterministic parameter init + driver
# ----------------------------------------------------------------------------

def init_params(key, C, K, H, W, hidden=8, f1=8, f2=8):
    ks = jax.random.split(key, 10)
    sc = 0.1
    grid2 = make_coordinate_grid(H, W).reshape(H * W, 2).astype(jnp.float32)
    # All weights are stored transposed ((out, in)) to match the
    # channels-on-sublane / pixels-on-lane kernel layout.
    params = {
        "kp": {
            "w": sc * jax.random.normal(ks[0], (K, C), jnp.float32),
            "b": jnp.zeros((K, 1), jnp.float32),
            "grid": grid2,
        },
        "gen": {
            "w1": sc * jax.random.normal(ks[1], (hidden, C + K), jnp.float32),
            "b1": jnp.zeros((hidden, 1), jnp.float32),
            "w2": sc * jax.random.normal(ks[2], (C, hidden), jnp.float32),
            "b2": jnp.zeros((C, 1), jnp.float32),
        },
        "disc": {
            "w1": sc * jax.random.normal(ks[3], (f1, C + K), jnp.float32),
            "b1": jnp.zeros((f1, 1), jnp.float32),
            "w2": sc * jax.random.normal(ks[4], (f2, f1), jnp.float32),
            "b2": jnp.zeros((f2, 1), jnp.float32),
            "w3": sc * jax.random.normal(ks[5], (1, f2), jnp.float32),
            "b3": jnp.zeros((1, 1), jnp.float32),
        },
    }
    return params


if __name__ == "__main__":
    B, C, T, H, W = 2, 3, 4, 16, 16
    K = 4

    key = jax.random.PRNGKey(0)
    k_src, k_vid, k_par = jax.random.split(key, 3)
    x = {
        "source": jax.random.uniform(k_src, (B, C, 1, H, W), jnp.float32),
        "video": jax.random.uniform(k_vid, (B, C, T, H, W), jnp.float32),
    }
    params = init_params(k_par, C, K, H, W)

    train_params = {
        "detach_kp_generator": False,
        "loss_weights": {
            "reconstruction_deformed": 10.0,
            "reconstruction": [10.0, 1.0, 1.0],
            "generator_gan": 1.0,
        },
    }
    opt = Opt()

    out = generator_full_model_forward(params, x, train_params, opt)
    out = jax.block_until_ready(out)

    # light sanity checks
    assert out[-2]["video_prediction"].shape == (B, C, T, H, W)
    assert out[-1]["kp_driving"]["mean"].shape == (B, T, K, 2)
    assert all(jnp.isfinite(l) for l in out[:-2])

    print("KERNEL_OK")
</pallas_src>

<mosaic_0001>
module attributes {stable_mosaic.version = 11 : i64} {
  func.func @_kp_kernel(%arg0: i32, %arg1: memref<1x3x256xf32, #tpu.memory_space<vmem>>, %arg2: memref<4x3xf32, #tpu.memory_space<vmem>>, %arg3: memref<4x1xf32, #tpu.memory_space<vmem>>, %arg4: memref<256x2xf32, #tpu.memory_space<vmem>>, %arg5: memref<1x4x2xf32, #tpu.memory_space<vmem>>) attributes {dimension_semantics = [#tpu.dimension_semantics<parallel>], iteration_bounds = array<i64: 10>, scalar_prefetch = 0 : i64, scratch_operands = 0 : i64, tpu.core_type = #tpu.core_type<tc>, window_params = [{transform_indices = @transform_0, window_bounds = array<i64: 1, 3, 256>}, {pipeline_mode = #tpu.pipeline_mode<synchronous>, transform_indices = @transform_1, window_bounds = array<i64: 4, 3>}, {pipeline_mode = #tpu.pipeline_mode<synchronous>, transform_indices = @transform_2, window_bounds = array<i64: 4, 1>}, {pipeline_mode = #tpu.pipeline_mode<synchronous>, transform_indices = @transform_3, window_bounds = array<i64: 256, 2>}, {transform_indices = @transform_4, window_bounds = array<i64: 1, 4, 2>}]} {
    %c0 = arith.constant 0 : index
    %c0_0 = arith.constant 0 : index
    %c0_1 = arith.constant 0 : index
    %0 = vector.load %arg1[%c0, %c0_0, %c0_1] : memref<1x3x256xf32, #tpu.memory_space<vmem>>, vector<1x3x256xf32>
    %1 = vector.shape_cast %0 : vector<1x3x256xf32> to vector<3x256xf32>
    %c0_2 = arith.constant 0 : index
    %c0_3 = arith.constant 0 : index
    %2 = vector.load %arg2[%c0_2, %c0_3] : memref<4x3xf32, #tpu.memory_space<vmem>>, vector<4x3xf32>
    %cst = arith.constant dense<0.000000e+00> : vector<4x256xf32>
    %3 = tpu.matmul %2, %1, %cst {dimension_numbers = #tpu.dot_dimension_numbers<[1], [0], [0], [1], [0, 0, 1, 1], [], []>} : vector<4x3xf32>, vector<3x256xf32>, vector<4x256xf32> -> vector<4x256xf32>
    %c0_4 = arith.constant 0 : index
    %c0_5 = arith.constant 0 : index
    %4 = vector.load %arg3[%c0_4, %c0_5] : memref<4x1xf32, #tpu.memory_space<vmem>>, vector<4x1xf32>
    %5 = vector.broadcast %4 : vector<4x1xf32> to vector<4x256xf32>
    %6 = arith.addf %3, %5 : vector<4x256xf32>
    %cst_6 = arith.constant dense<0xFF800000> : vector<4xf32>
    %7 = vector.multi_reduction <maximumf>, %6, %cst_6 [1] : vector<4x256xf32> to vector<4xf32>
    %8 = vector.shape_cast %7 : vector<4xf32> to vector<4x1xf32>
    %9 = vector.broadcast %8 : vector<4x1xf32> to vector<4x256xf32>
    %10 = arith.subf %6, %9 : vector<4x256xf32>
    %11 = math.exp %10 : vector<4x256xf32>
    %cst_7 = arith.constant dense<0.000000e+00> : vector<4xf32>
    %12 = vector.multi_reduction <add>, %11, %cst_7 [1] : vector<4x256xf32> to vector<4xf32>
    %13 = vector.shape_cast %12 : vector<4xf32> to vector<4x1xf32>
    %14 = vector.broadcast %13 : vector<4x1xf32> to vector<4x256xf32>
    %15 = arith.divf %11, %14 : vector<4x256xf32>
    %c0_8 = arith.constant 0 : index
    %c0_9 = arith.constant 0 : index
    %16 = vector.load %arg4[%c0_8, %c0_9] : memref<256x2xf32, #tpu.memory_space<vmem>>, vector<256x2xf32>
    %cst_10 = arith.constant dense<0.000000e+00> : vector<4x2xf32>
    %17 = tpu.matmul %15, %16, %cst_10 {dimension_numbers = #tpu.dot_dimension_numbers<[1], [0], [0], [1], [0, 0, 1, 1], [], []>} : vector<4x256xf32>, vector<256x2xf32>, vector<4x2xf32> -> vector<4x2xf32>
    %18 = vector.shape_cast %17 : vector<4x2xf32> to vector<1x4x2xf32>
    %c0_11 = arith.constant 0 : index
    %c0_12 = arith.constant 0 : index
    %c0_13 = arith.constant 0 : index
    %19 = vector.load %arg5[%c0_11, %c0_12, %c0_13] : memref<1x4x2xf32, #tpu.memory_space<vmem>>, vector<1x4x2xf32>
    tpu.vector_store %arg5[%c0_11, %c0_12, %c0_13], %18 {strides = array<i32>} : memref<1x4x2xf32, #tpu.memory_space<vmem>>, vector<1x4x2xf32>,
    return
  }
  func.func @transform_0(%arg0: i32) -> (i32, i32, i32) {
    %c0_i32 = arith.constant 0 : i32
    %c0_i32_0 = arith.constant 0 : i32
    %c0_i32_1 = arith.constant 0 : i32
    return %arg0, %c0_i32, %c0_i32_0 : i32, i32, i32
  }
  func.func @transform_1(%arg0: i32) -> (i32, i32) {
    %c0_i32 = arith.constant 0 : i32
    %c0_i32_0 = arith.constant 0 : i32
    %c0_i32_1 = arith.constant 0 : i32
    return %c0_i32, %c0_i32_0 : i32, i32
  }
  func.func @transform_2(%arg0: i32) -> (i32, i32) {
    %c0_i32 = arith.constant 0 : i32
    %c0_i32_0 = arith.constant 0 : i32
    %c0_i32_1 = arith.constant 0 : i32
    return %c0_i32, %c0_i32_0 : i32, i32
  }
  func.func @transform_3(%arg0: i32) -> (i32, i32) {
    %c0_i32 = arith.constant 0 : i32
    %c0_i32_0 = arith.constant 0 : i32
    %c0_i32_1 = arith.constant 0 : i32
    return %c0_i32, %c0_i32_0 : i32, i32
  }
  func.func @transform_4(%arg0: i32) -> (i32, i32, i32) {
    %c0_i32 = arith.constant 0 : i32
    %c0_i32_0 = arith.constant 0 : i32
    %c0_i32_1 = arith.constant 0 : i32
    return %arg0, %c0_i32, %c0_i32_0 : i32, i32, i32
  }
}

</mosaic_0001>

<llo_original>
// kernel: tpu_custom_call.1
$region0: #{tpu_custom_call.1}
  #allocation0 [shape = 'u32[]', space=smem, size = 0x4, offset = 0x4, fixed_abs, tag = 'smem constant byte address 0x4 - core index']
  #allocation1 [shape = 'u32[144,128]{1,0:T(1,128)}', space=vmem, size = 0x12000, scoped, tag = 'internal scratch']
  %s0 = inlined_call_operand.vmem [shape: f32[10,3,256], index: 0, kind: input, shape index: {}]
  %s1 = inlined_call_operand.vmem [shape: f32[4,3], index: 1, kind: input, shape index: {}]
  %s2 = inlined_call_operand.vmem [shape: f32[4,1], index: 2, kind: input, shape index: {}]
  %s3 = inlined_call_operand.vmem [shape: f32[256,2], index: 3, kind: input, shape index: {}]
  %s4 = inlined_call_operand.vmem [shape: f32[10,4,2], index: 4, kind: output, shape index: {}]
  %s5 = sld [smem:[#allocation0]]
  $region49: #{tpu_custom_call.1} parent=0
    _
  %s7 = ssub.s32 1, %s5
  %s8 = scalar_select 0, %s7, %s5
  loop: start=0, step=1, limit=12
  $region2: #{tpu_custom_call.1} parent=0 // loop_pre_header
    _
  $region3: #{tpu_custom_call.1} parent=0 // loop_header
    %s10 = sphi 0, %s14
    %p11 = scmp.ge.s32.totalorder %s10, 12
    %s20 = sphi 0, %s22
    %s23 = sphi 0, %s20
    %s24 = sphi 0, %s23
    %s40 = sphi 0, %s24
    %s44 = sphi 0, %s44
    %s46 = sphi 0, %s44
    %s47 = sphi 0, %s46
    %s61 = sphi 0, %s47
    %s65 = sphi 0, %s65
    %s67 = sphi 0, %s65
    %s68 = sphi 0, %s67
    %s82 = sphi 0, %s68
    %s86 = sphi 0, %s86
    %s88 = sphi 0, %s86
    %s89 = sphi 0, %s88
    %s103 = sphi 0, %s89
    %s109 = sphi 0, %s111
    %s112 = sphi 0, %s109
    %s113 = sphi 0, %s112
    %s129 = sphi 0, %s113
  $region4: #{tpu_custom_call.1} parent=0 // loop_header_branch
    %13 = sbr.rel (%p11) target = $region8
  $region5: #{tpu_custom_call.1} parent=0 // loop_body
    %s15 = ssub.s32 %s10, 1
    %s16 = ssub.s32 %s10, 2
    %s17 = sadd.s32 %s10, 1
    %s18 = ssub.s32 %s10, %s17
    %p19 = scmp.eq.s32.totalorder %s18, 0
    %s21 = sadd.s32 %s20, 1
    %s22 = scalar_select %p19, %s20, %s21
    %p25 = pneg %p19
    %p26 = scmp.eq.s32.totalorder %s10, 9
    %p27 = por %p25, %p26
    %p28 = scmp.ne.s32.totalorder %s20, %s23
    %p29 = scmp.eq.s32.totalorder %s10, 0
    %p30 = por %p28, %p29
    %p31 = scmp.ne.s32.totalorder %s20, %s23
    %p32 = scmp.eq.s32.totalorder %s15, 9
    %p33 = por %p31, %p32
    %p34 = scmp.ne.s32.totalorder %s23, %s24
    %p35 = scmp.eq.s32.totalorder %s15, 0
    %p36 = por %p34, %p35
    %p37 = scmp.ne.s32.totalorder %s23, %s24
    %p38 = scmp.eq.s32.totalorder %s16, 9
    %p39 = por %p37, %p38
    %p41 = scmp.ne.s32.totalorder %s24, %s40
    %p42 = scmp.eq.s32.totalorder %s16, 0
    %p43 = por %p41, %p42
    %s45 = sadd.s32 %s44, 1
    %p48 = scmp.eq.s32.totalorder %s10, 9
    %p49 = scmp.ne.s32.totalorder %s44, %s46
    %p50 = scmp.eq.s32.totalorder %s10, 0
    %p51 = por %p49, %p50
    %p52 = scmp.ne.s32.totalorder %s44, %s46
    %p53 = scmp.eq.s32.totalorder %s15, 9
    %p54 = por %p52, %p53
    %p55 = scmp.ne.s32.totalorder %s46, %s47
    %p56 = scmp.eq.s32.totalorder %s15, 0
    %p57 = por %p55, %p56
    %p58 = scmp.ne.s32.totalorder %s46, %s47
    %p59 = scmp.eq.s32.totalorder %s16, 9
    %p60 = por %p58, %p59
    %p62 = scmp.ne.s32.totalorder %s47, %s61
    %p63 = scmp.eq.s32.totalorder %s16, 0
    %p64 = por %p62, %p63
    %s66 = sadd.s32 %s65, 1
    %p69 = scmp.eq.s32.totalorder %s10, 9
    %p70 = scmp.ne.s32.totalorder %s65, %s67
    %p71 = scmp.eq.s32.totalorder %s10, 0
    %p72 = por %p70, %p71
    %p73 = scmp.ne.s32.totalorder %s65, %s67
    %p74 = scmp.eq.s32.totalorder %s15, 9
    %p75 = por %p73, %p74
    %p76 = scmp.ne.s32.totalorder %s67, %s68
    %p77 = scmp.eq.s32.totalorder %s15, 0
    %p78 = por %p76, %p77
    %p79 = scmp.ne.s32.totalorder %s67, %s68
    %p80 = scmp.eq.s32.totalorder %s16, 9
    %p81 = por %p79, %p80
    %p83 = scmp.ne.s32.totalorder %s68, %s82
    %p84 = scmp.eq.s32.totalorder %s16, 0
    %p85 = por %p83, %p84
    %s87 = sadd.s32 %s86, 1
    %p90 = scmp.eq.s32.totalorder %s10, 9
    %p91 = scmp.ne.s32.totalorder %s86, %s88
    %p92 = scmp.eq.s32.totalorder %s10, 0
    %p93 = por %p91, %p92
    %p94 = scmp.ne.s32.totalorder %s86, %s88
    %p95 = scmp.eq.s32.totalorder %s15, 9
    %p96 = por %p94, %p95
    %p97 = scmp.ne.s32.totalorder %s88, %s89
    %p98 = scmp.eq.s32.totalorder %s15, 0
    %p99 = por %p97, %p98
    %p100 = scmp.ne.s32.totalorder %s88, %s89
    %p101 = scmp.eq.s32.totalorder %s16, 9
    %p102 = por %p100, %p101
    %p104 = scmp.ne.s32.totalorder %s89, %s103
    %p105 = scmp.eq.s32.totalorder %s16, 0
    %p106 = por %p104, %p105
    %s107 = ssub.s32 %s10, %s17
    %p108 = scmp.eq.s32.totalorder %s107, 0
    %s110 = sadd.s32 %s109, 1
    %s111 = scalar_select %p108, %s109, %s110
    %p114 = pneg %p108
    %p115 = scmp.eq.s32.totalorder %s10, 9
    %p116 = por %p114, %p115
    %p117 = scmp.ne.s32.totalorder %s109, %s112
    %p118 = scmp.eq.s32.totalorder %s10, 0
    %p119 = por %p117, %p118
    %p120 = scmp.ne.s32.totalorder %s109, %s112
    %p121 = scmp.eq.s32.totalorder %s15, 9
    %p122 = por %p120, %p121
    %p123 = scmp.ne.s32.totalorder %s112, %s113
    %p124 = scmp.eq.s32.totalorder %s15, 0
    %p125 = por %p123, %p124
    %p126 = scmp.ne.s32.totalorder %s112, %s113
    %p127 = scmp.eq.s32.totalorder %s16, 9
    %p128 = por %p126, %p127
    %p130 = scmp.ne.s32.totalorder %s113, %s129
    %p131 = scmp.eq.s32.totalorder %s16, 0
    %p132 = por %p130, %p131
    %p133 = scmp.le.s32.totalorder 1, %s10
    %p134 = scmp.lt.s32.totalorder %s10, 11
    %p135 = pnand %p133, %p134
    %p136 = pneg %p135
    // Predicated region
    $region9: #{tpu_custom_call.1} parent=5 // pred_check
      _
    $region10: #{tpu_custom_call.1} parent=5 // pred_check_branch
      %138 = sbr.rel (%p135) target = $region12
    $region11: #{tpu_custom_call.1} parent=5 // pred_region
      %s139 = ssub.s32 %s10, 1
      // Predicated region
      $region13: #{tpu_custom_call.1} parent=11 // pred_check
        %p140 = pneg %p57
      $region14: #{tpu_custom_call.1} parent=11 // pred_check_branch
        %142 = sbr.rel (%p140) target = $region16
      $region15: #{tpu_custom_call.1} parent=11 // pred_region
        _
      $region16: #{tpu_custom_call.1} parent=11 // pred_fallthru
        _
      // Predicated region
      $region17: #{tpu_custom_call.1} parent=11 // pred_check
        %p143 = pneg %p78
      $region18: #{tpu_custom_call.1} parent=11 // pred_check_branch
        %145 = sbr.rel (%p143) target = $region20
      $region19: #{tpu_custom_call.1} parent=11 // pred_region
        _
      $region20: #{tpu_custom_call.1} parent=11 // pred_fallthru
        _
      // Predicated region
      $region21: #{tpu_custom_call.1} parent=11 // pred_check
        %p146 = pneg %p99
      $region22: #{tpu_custom_call.1} parent=11 // pred_check_branch
        %148 = sbr.rel (%p146) target = $region24
      $region23: #{tpu_custom_call.1} parent=11 // pred_region
        _
      $region24: #{tpu_custom_call.1} parent=11 // pred_fallthru
        _
    $region12: #{tpu_custom_call.1} parent=5 // pred_fallthru
      _
    %p149 = scmp.lt.s32.totalorder %s10, 10
    // Predicated region
    $region25: #{tpu_custom_call.1} parent=5 // pred_check
      %p150 = pneg %p149
    $region26: #{tpu_custom_call.1} parent=5 // pred_check_branch
      %152 = sbr.rel (%p150) target = $region28
    $region27: #{tpu_custom_call.1} parent=5 // pred_region
      // Predicated region
      $region29: #{tpu_custom_call.1} parent=27 // pred_check
        %p153 = pneg %p30
      $region30: #{tpu_custom_call.1} parent=27 // pred_check_branch
        %155 = sbr.rel (%p153) target = $region32
      $region31: #{tpu_custom_call.1} parent=27 // pred_region
        %p156 = scmp.lt.s32.totalorder %s10, 9
        %s157 = scalar_select %p156, %s10, 9
        %s158 = smul.addr %s157, 2
        %s159 = smul.addr %s158, 4
        %s160 = scalar_lea.vmem %s0, %s159
      $region32: #{tpu_custom_call.1} parent=27 // pred_fallthru
        _
    $region28: #{tpu_custom_call.1} parent=5 // pred_fallthru
      _
    %p161 = scmp.le.s32.totalorder 1, %s10
    %p162 = scmp.lt.s32.totalorder %s10, 11
    %p163 = pnand %p161, %p162
    %p164 = pneg %p163
    // Predicated region
    $region33: #{tpu_custom_call.1} parent=5 // pred_check
      _
    $region34: #{tpu_custom_call.1} parent=5 // pred_check_branch
      %166 = sbr.rel (%p163) target = $region36
    $region35: #{tpu_custom_call.1} parent=5 // pred_region
      %s167 = ssub.s32 %s10, 1
      %p168 = scmp.lt.s32.totalorder %s15, 9
      %s169 = scalar_select %p168, %s15, 9
      %s170 = smul.addr %s169, 2
      %s171 = smul.addr %s170, 4
      %s172 = scalar_lea.vmem %s0, %s171
      %p173 = pneg %p36
      %p174 = pneg %p33
      %p175 = pneg %p57
      %p176 = pneg %p54
      %p177 = pneg %p78
      %p178 = pneg %p75
      %p179 = pneg %p99
      %p180 = pneg %p96
      %p181 = pneg %p125
      %p182 = pneg %p122
      %p183 = scmp.lt.s32.totalorder %s15, 9
      %s184 = scalar_select %p183, %s15, 9
      %s185 = smul.addr %s184, 4
      %s186 = scalar_lea.vmem %s4, %s185
      %p187 = scmp.lt.s32.totalorder %s15, 9
      %s188 = scalar_select %p187, %s15, 9
      %s189 = smul.addr %s188, 2
      %s190 = smul.addr %s189, 4
      %s191 = scalar_lea.vmem %s0, %s190
      %p192 = scmp.lt.s32.totalorder %s15, 9
      %s193 = scalar_select %p192, %s15, 9
      %s194 = smul.addr %s193, 4
      %s195 = scalar_lea.vmem %s4, %s194
      %v196 = vld [vmem:[%s191] sm:$0x77]
      %v197 = vld [vmem:[%s1] sm:$0xf]
      %v198 = vld [vmem:[%s2] sm:$0xf]
      %200 = vset.pattern.permute.xlu0 0
      %201 = vperm.xlu0 %200, %v198
      %v202 = vpop.permute.xlu0 %201
      %v205 = vcombine.high %v196, %v196
      %vm206 = vcmask 23552
      %v208 = vsel %vm206, %v197, 0
      %vm210 = vcmask 1042432
      %v211 = vsel %vm210, %v196, 0
      %v213 = vsel %vm210, %v205, 0
      %215 = vmatprep.subr.mxu0 %v213
      %216 = vmatpush1.msra.mxu0 %v211
      %217 = vmatprep.subr.mxu0 0.0
      %218 = vmatpush1.msra.mxu0 0.0
      %219 = vmatprep.subr.mxu0 0.0
      %220 = vmatpush1.msra.mxu0 0.0
      %221 = vmatprep.subr.mxu0 0.0
      %222 = vmatpush1.msra.mxu0 0.0
      %223 = vmatprep.subr.mxu0 0.0
      %224 = vmatpush1.msra.mxu0 0.0
      %225 = vmatprep.subr.mxu0 0.0
      %226 = vmatpush1.msra.mxu0 0.0
      %227 = vmatprep.subr.mxu0 0.0
      %228 = vmatpush1.msra.mxu0 0.0
      %229 = vmatprep.subr.mxu0 0.0
      %230 = vmatpush1.msra.mxu0 0.0
      %231 = vmatprep.subr.mxu0 0.0
      %232 = vmatpush1.msra.mxu0 0.0
      %233 = vmatprep.subr.mxu0 0.0
      %234 = vmatpush1.msra.mxu0 0.0
      %235 = vmatprep.subr.mxu0 0.0
      %236 = vmatpush1.msra.mxu0 0.0
      %237 = vmatprep.subr.mxu0 0.0
      %238 = vmatpush1.msra.mxu0 0.0
      %239 = vmatprep.subr.mxu0 0.0
      %240 = vmatpush1.msra.mxu0 0.0
      %241 = vmatprep.subr.mxu0 0.0
      %242 = vmatpush1.msra.mxu0 0.0
      %243 = vmatprep.subr.mxu0 0.0
      %244 = vmatpush1.msra.mxu0 0.0
      %245 = vmatprep.subr.mxu0 0.0
      %246 = vmatpush1.msra.mxu0 0.0
      %247 = vmatprep.subr.mxu0 0.0
      %248 = vmatpush1.msra.mxu0 0.0
      %249 = vmatprep.subr.mxu0 0.0
      %250 = vmatpush1.msra.mxu0 0.0
      %251 = vmatprep.subr.mxu0 0.0
      %252 = vmatpush1.msra.mxu0 0.0
      %253 = vmatprep.subr.mxu0 0.0
      %254 = vmatpush1.msra.mxu0 0.0
      %255 = vmatprep.subr.mxu0 0.0
      %256 = vmatpush1.msra.mxu0 0.0
      %257 = vmatprep.subr.mxu0 0.0
      %258 = vmatpush1.msra.mxu0 0.0
      %259 = vmatprep.subr.mxu0 0.0
      %260 = vmatpush1.msra.mxu0 0.0
      %261 = vmatprep.subr.mxu0 0.0
      %262 = vmatpush1.msra.mxu0 0.0
      %263 = vmatprep.subr.mxu0 0.0
      %264 = vmatpush1.msra.mxu0 0.0
      %265 = vmatprep.subr.mxu0 0.0
      %266 = vmatpush1.msra.mxu0 0.0
      %267 = vmatprep.subr.mxu0 0.0
      %268 = vmatpush1.msra.mxu0 0.0
      %269 = vmatprep.subr.mxu0 0.0
      %270 = vmatpush1.msra.mxu0 0.0
      %271 = vmatprep.subr.mxu0 0.0
      %272 = vmatpush1.msra.mxu0 0.0
      %273 = vmatprep.subr.mxu0 0.0
      %274 = vmatpush1.msra.mxu0 0.0
      %275 = vmatprep.subr.mxu0 0.0
      %276 = vmatpush1.msra.mxu0 0.0
      %277 = vmatprep.subr.mxu0 0.0
      %278 = vmatpush1.msra.mxu0 0.0
      %279 = vmatprep.mubr.f32.mxu0 0.0
      %280 = vmatmul.mubr.f32.gmra.mrb[0].mxu0 %v208
      %v281 = vpop.f32.mrb[0].mxu0
      %v282 = vadd.f32 %v202, %v281
      %v283 = vpop.f32.mrb[0].mxu0
      %v284 = vadd.f32 %v202, %v283
      %285 = vdwg.mxu0
      %vm286 = vcmask 1043456
      %v287 = vsel %vm286, %v282, -inf
      %v288 = vsel %vm286, %v284, -inf
      %v289 = vmax.f32 %v287, %v288
      %290 = vmax.xlane.f32.xlu0 %v289
      %v291 = vpop.xlane.xlu0 %290
      %v292 = vsub.f32 %v282, %v291
      %v293 = vsub.f32 %v284, %v291
      %v294 = vmul.f32 %v292, 1.442695
      %v295 = vpow.pop %v294
      %v296 = vmul.f32 %v293, 1.442695
      %v297 = vpow.pop %v296
      %v298 = vsel %vm286, %v295, 0.0
      %v299 = vsel %vm286, %v297, 0.0
      %v300 = vadd.f32 %v298, %v299
      %301 = vadd.xlane.f32.xlu0 %v300
      %v302 = vpop.xlane.xlu0 %301
      %v303 = vrcp.pop %v302
      %v304 = vmul.f32 %v295, %v303
      %v305 = vmul.f32 %v297, %v303
      %v306 = vld [vmem:[%s3] sm:$0xff]
      %v307 = vld [vmem:[%s3 + $0x8] sm:$0xff]
      %v308 = vld [vmem:[%s3 + $0x10] sm:$0xff]
      %v309 = vld [vmem:[%s3 + $0x18] sm:$0xff]
      %v310 = vld [vmem:[%s3 + $0x20] sm:$0xff]
      %v311 = vld [vmem:[%s3 + $0x28] sm:$0xff]
      %v312 = vld [vmem:[%s3 + $0x30] sm:$0xff]
      %v313 = vld [vmem:[%s3 + $0x38] sm:$0xff]
      %v314 = vld [vmem:[%s3 + $0x40] sm:$0xff]
      %v315 = vld [vmem:[%s3 + $0x48] sm:$0xff]
      %v316 = vld [vmem:[%s3 + $0x50] sm:$0xff]
      %v317 = vld [vmem:[%s3 + $0x58] sm:$0xff]
      %v318 = vld [vmem:[%s3 + $0x60] sm:$0xff]
      %v319 = vld [vmem:[%s3 + $0x68] sm:$0xff]
      %v320 = vld [vmem:[%s3 + $0x70] sm:$0xff]
      %v321 = vld [vmem:[%s3 + $0x78] sm:$0xff]
      %v322 = vld [vmem:[%s3 + $0x80] sm:$0xff]
      %v323 = vld [vmem:[%s3 + $0x88] sm:$0xff]
      %v324 = vld [vmem:[%s3 + $0x90] sm:$0xff]
      %v325 = vld [vmem:[%s3 + $0x98] sm:$0xff]
      %v326 = vld [vmem:[%s3 + $0xa0] sm:$0xff]
      %v327 = vld [vmem:[%s3 + $0xa8] sm:$0xff]
      %v328 = vld [vmem:[%s3 + $0xb0] sm:$0xff]
      %v329 = vld [vmem:[%s3 + $0xb8] sm:$0xff]
      %v330 = vld [vmem:[%s3 + $0xc0] sm:$0xff]
      %v331 = vld [vmem:[%s3 + $0xc8] sm:$0xff]
      %v332 = vld [vmem:[%s3 + $0xd0] sm:$0xff]
      %v333 = vld [vmem:[%s3 + $0xd8] sm:$0xff]
      %v334 = vld [vmem:[%s3 + $0xe0] sm:$0xff]
      %v335 = vld [vmem:[%s3 + $0xe8] sm:$0xff]
      %v336 = vld [vmem:[%s3 + $0xf0] sm:$0xff]
      %v337 = vld [vmem:[%s3 + $0xf8] sm:$0xff]
      %338 = vmatprep.subr.mxu0 0.0
      %339 = vmatpush1.msra.mxu0 %v306
      %340 = vmatprep.subr.mxu0 0.0
      %341 = vmatpush1.msra.mxu0 %v307
      %342 = vmatprep.subr.mxu0 0.0
      %343 = vmatpush1.msra.mxu0 %v308
      %344 = vmatprep.subr.mxu0 0.0
      %345 = vmatpush1.msra.mxu0 %v309
      %346 = vmatprep.subr.mxu0 0.0
      %347 = vmatpush1.msra.mxu0 %v310
      %348 = vmatprep.subr.mxu0 0.0
      %349 = vmatpush1.msra.mxu0 %v311
      %350 = vmatprep.subr.mxu0 0.0
      %351 = vmatpush1.msra.mxu0 %v312
      %352 = vmatprep.subr.mxu0 0.0
      %353 = vmatpush1.msra.mxu0 %v313
      %354 = vmatprep.subr.mxu0 0.0
      %355 = vmatpush1.msra.mxu0 %v314
      %356 = vmatprep.subr.mxu0 0.0
      %357 = vmatpush1.msra.mxu0 %v315
      %358 = vmatprep.subr.mxu0 0.0
      %359 = vmatpush1.msra.mxu0 %v316
      %360 = vmatprep.subr.mxu0 0.0
      %361 = vmatpush1.msra.mxu0 %v317
      %362 = vmatprep.subr.mxu0 0.0
      %363 = vmatpush1.msra.mxu0 %v318
      %364 = vmatprep.subr.mxu0 0.0
      %365 = vmatpush1.msra.mxu0 %v319
      %366 = vmatprep.subr.mxu0 0.0
      %367 = vmatpush1.msra.mxu0 %v320
      %368 = vmatprep.subr.mxu0 0.0
      %369 = vmatpush1.msra.mxu0 %v321
      %370 = vmatprep.subr.mxu0 0.0
      %371 = vmatpush1.msra.mxu0 %v322
      %372 = vmatprep.subr.mxu0 0.0
      %373 = vmatpush1.msra.mxu0 %v323
      %374 = vmatprep.subr.mxu0 0.0
      %375 = vmatpush1.msra.mxu0 %v324
      %376 = vmatprep.subr.mxu0 0.0
      %377 = vmatpush1.msra.mxu0 %v325
      %378 = vmatprep.subr.mxu0 0.0
      %379 = vmatpush1.msra.mxu0 %v326
      %380 = vmatprep.subr.mxu0 0.0
      %381 = vmatpush1.msra.mxu0 %v327
      %382 = vmatprep.subr.mxu0 0.0
      %383 = vmatpush1.msra.mxu0 %v328
      %384 = vmatprep.subr.mxu0 0.0
      %385 = vmatpush1.msra.mxu0 %v329
      %386 = vmatprep.subr.mxu0 0.0
      %387 = vmatpush1.msra.mxu0 %v330
      %388 = vmatprep.subr.mxu0 0.0
      %389 = vmatpush1.msra.mxu0 %v331
      %390 = vmatprep.subr.mxu0 0.0
      %391 = vmatpush1.msra.mxu0 %v332
      %392 = vmatprep.subr.mxu0 0.0
      %393 = vmatpush1.msra.mxu0 %v333
      %394 = vmatprep.subr.mxu0 0.0
      %395 = vmatpush1.msra.mxu0 %v334
      %396 = vmatprep.subr.mxu0 0.0
      %397 = vmatpush1.msra.mxu0 %v335
      %398 = vmatprep.subr.mxu0 0.0
      %399 = vmatpush1.msra.mxu0 %v336
      %400 = vmatprep.subr.mxu0 0.0
      %401 = vmatpush1.msra.mxu0 %v337
      %402 = vmatprep.mubr.f32.mxu0 %v305
      %403 = vmatmul.mubr.f32.gmra.mrb[0].mxu0 %v304
      %v404 = vpop.f32.mrb[0].mxu0
      %v405 = vadd.f32 0.0, %v404
      %v406 = vpop.f32.mrb[0].mxu0
      %407 = vdwg.mxu0
      %vm408 = vcmask 11264
      %409 = vst.msk [vmem:[%s195] sm:$0xf] %vm408, %v405
      %p410 = scmp.lt.s32.totalorder %s15, 9
      %s411 = scalar_select %p410, %s15, 9
      %s412 = smul.addr %s411, 4
      %s413 = scalar_lea.vmem %s4, %s412
      // Predicated region
      $region37: #{tpu_custom_call.1} parent=35 // pred_check
        %p414 = pneg %p122
      $region38: #{tpu_custom_call.1} parent=35 // pred_check_branch
        %416 = sbr.rel (%p414) target = $region40
      $region39: #{tpu_custom_call.1} parent=35 // pred_region
        _
      $region40: #{tpu_custom_call.1} parent=35 // pred_fallthru
        _
    $region36: #{tpu_custom_call.1} parent=5 // pred_fallthru
      _
    %p417 = scmp.le.s32.totalorder 2, %s10
    // Predicated region
    $region41: #{tpu_custom_call.1} parent=5 // pred_check
      %p418 = pneg %p417
    $region42: #{tpu_custom_call.1} parent=5 // pred_check_branch
      %420 = sbr.rel (%p418) target = $region44
    $region43: #{tpu_custom_call.1} parent=5 // pred_region
      %s421 = ssub.s32 %s10, 2
      // Predicated region
      $region45: #{tpu_custom_call.1} parent=43 // pred_check
        %p422 = pneg %p128
      $region46: #{tpu_custom_call.1} parent=43 // pred_check_branch
        %424 = sbr.rel (%p422) target = $region48
      $region47: #{tpu_custom_call.1} parent=43 // pred_region
        %p425 = scmp.lt.s32.totalorder %s16, 9
        %s426 = scalar_select %p425, %s16, 9
        %s427 = smul.addr %s426, 4
        %s428 = scalar_lea.vmem %s4, %s427
      $region48: #{tpu_custom_call.1} parent=43 // pred_fallthru
        _
    $region44: #{tpu_custom_call.1} parent=5 // pred_fallthru
      _
  $region6: #{tpu_custom_call.1} parent=0 // loop_footer
    %s14 = sadd.s32 1, %s10
  $region7: #{tpu_custom_call.1} parent=0 // loop_footer_branch
    %9 = sbr.rel target = $region3
  $region8: #{tpu_custom_call.1} parent=0 // loop_exit
    _

</llo_original>
